<compile_context>
chip_gen: v5e
topology: v5e:2x2
jax: 0.10.0
libtpu: 0.0.40
codegen_flags: <defaults>
</compile_context>

<pallas_src>
import jax
import jax.numpy as jnp
from jax.experimental import pallas as pl
from jax.experimental.pallas import tpu as pltpu

_LANE = 128
_SUBLANE_ALIGN = 32            # valid sublane multiple for f32(8)/bf16(16)/int8(32)
_TARGET_BLOCK_BYTES = 8 << 20  # ~8 MiB per grid step (per perf review)


# ------------------------------- kernel ---------------------------------------

def _build_kernel(g_static, b_static, g_dyn, b_dyn, compute_dtype):
    """Specialise the kernel on which scalars exist and how they are passed."""

    def kernel(*refs):
        i = 0
        g_ref = b_ref = None
        if g_dyn:
            g_ref = refs[i]; i += 1
        if b_dyn:
            b_ref = refs[i]; i += 1
        x_ref, o_ref = refs[i], refs[i + 1]

        y = x_ref[...].astype(compute_dtype)
        if g_dyn:
            y = y * g_ref[0, 0].astype(compute_dtype)
        elif g_static is not None:
            y = y * jnp.asarray(g_static, compute_dtype)
        if b_dyn:
            y = y + b_ref[0, 0].astype(compute_dtype)
        elif b_static is not None:
            y = y + jnp.asarray(b_static, compute_dtype)
        o_ref[...] = y.astype(o_ref.dtype)

    return kernel


def _is_static_scalar(v):
    return isinstance(v, (bool, int, float))


# ------------------------------- wrapper ---------------------------------------

def ms_pallas(x, gamma=None, beta=None, *, donate=False, block_bytes=None):
    """Elementwise y = x * gamma + beta; gamma/beta optional scalars."""
    if gamma is None and beta is None:
        return x

    orig_shape = x.shape
    orig_dtype = x.dtype
    total = int(x.size)
    if total == 0:
        return x

    flat = x.reshape(-1)

    # Pad ONLY when the element count is not a multiple of 128 lanes (rare).
    rem = total % _LANE
    padded_total = total if rem == 0 else total + (_LANE - rem)
    if padded_total != total:
        flat = jnp.pad(flat, (0, padded_total - total))
    rows = padded_total // _LANE
    x2 = flat.reshape(rows, _LANE)          # free reshape: lane-dense slab

    # Block size in bytes, scaled by itemsize; rows rounded to 32 sublanes.
    itemsize = jnp.dtype(orig_dtype).itemsize
    tgt_bytes = _TARGET_BLOCK_BYTES if block_bytes is None else int(block_bytes)
    max_block_rows = max(
        _SUBLANE_ALIGN,
        (tgt_bytes // (_LANE * itemsize)) // _SUBLANE_ALIGN * _SUBLANE_ALIGN)
    # Full-extent block if the whole thing fits; otherwise a 32-aligned block
    # and Pallas masks the trailing partial block (no padding needed).
    block_rows = rows if rows <= max_block_rows else max_block_rows
    grid = ((rows + block_rows - 1) // block_rows,)

    # Floating inputs compute in their own dtype (no f32 promotion of bf16
    # blocks); integer inputs compute in f32 and truncate back.
    # TODO(synk): integer x with float gamma/beta differs from PyTorch, which
    # raises for in-place float updates of integer tensors.
    compute_dtype = orig_dtype if jnp.issubdtype(orig_dtype, jnp.floating) else jnp.float32

    # Scalars: bake Python numbers as constants; traced/array values -> SMEM.
    smem_spec = pl.BlockSpec(memory_space=pltpu.MemorySpace.SMEM)
    scalar_args, scalar_specs = [], []
    g_dyn = gamma is not None and not _is_static_scalar(gamma)
    b_dyn = beta is not None and not _is_static_scalar(beta)
    if g_dyn:
        scalar_args.append(jnp.asarray(gamma, jnp.float32).reshape(1, 1))
        scalar_specs.append(smem_spec)
    if b_dyn:
        scalar_args.append(jnp.asarray(beta, jnp.float32).reshape(1, 1))
        scalar_specs.append(smem_spec)
    g_static = gamma if (gamma is not None and not g_dyn) else None
    b_static = beta if (beta is not None and not b_dyn) else None

    kernel = _build_kernel(g_static, b_static, g_dyn, b_dyn, compute_dtype)

    # VMEM budget: 2x double-buffered (in + out) blocks plus headroom.
    block_bytes_actual = block_rows * _LANE * itemsize
    vmem_limit = min(56 << 20, 4 * block_bytes_actual + (8 << 20))

    # Optional in-place-style aliasing (PyTorch mul_/add_ semantics).
    io_aliases = {len(scalar_args): 0} if donate else {}

    out = pl.pallas_call(
        kernel,
        out_shape=jax.ShapeDtypeStruct((rows, _LANE), orig_dtype),
        grid_spec=pltpu.PrefetchScalarGridSpec(
            num_scalar_prefetch=0,
            grid=grid,
            in_specs=scalar_specs + [
                pl.BlockSpec((block_rows, _LANE), lambda i: (i, 0))],
            out_specs=pl.BlockSpec((block_rows, _LANE), lambda i: (i, 0)),
        ),
        compiler_params=pltpu.CompilerParams(
            dimension_semantics=("parallel",),
            vmem_limit_bytes=vmem_limit),
        input_output_aliases=io_aliases,
    )(*scalar_args, x2)

    if padded_total != total:
        out = out.reshape(-1)[:total]
    return out.reshape(orig_shape)


# ------------------------------ module shim ------------------------------------

class MS:
    """JAX/Pallas equivalent of the PyTorch MS module (functional, not in-place)."""

    def __init__(self, beta=None, gamma=None):
        self.gamma, self.beta = gamma, beta

    def __call__(self, x, beta=None, gamma=None):
        beta = self.beta if beta is None else beta
        gamma = self.gamma if gamma is None else gamma
        return ms_pallas(x, gamma=gamma, beta=beta)


# --------------------------------- main -----------------------------------------

if __name__ == "__main__":
    key = jax.random.PRNGKey(0)
    k0, k1, k2 = jax.random.split(key, 3)
    x = jax.random.normal(k0, (2, 4, 16, 16), dtype=jnp.float32)

    # --- gamma and beta (module-level params, baked constants) ---
    mod = MS(beta=0.5, gamma=2.0)
    y = jax.block_until_ready(mod(x))
    ref = x * 2.0 + 0.5
    assert y.shape == x.shape and y.dtype == x.dtype
    assert jnp.allclose(y, ref, atol=1e-6, rtol=1e-6)

    # --- gamma only (call-time override) ---
    y_g = jax.block_until_ready(MS()(x, gamma=3.0))
    assert jnp.allclose(y_g, x * 3.0, atol=1e-6, rtol=1e-6)

    # --- beta only ---
    y_b = jax.block_until_ready(MS(beta=1.25)(x))
    assert jnp.allclose(y_b, x + 1.25, atol=1e-6, rtol=1e-6)

    # --- neither: identity ---
    y_id = jax.block_until_ready(MS()(x))
    assert jnp.allclose(y_id, x)

    # --- aliased / donatable output path (mirrors PyTorch in-place) ---
    y_d = jax.block_until_ready(ms_pallas(x, gamma=2.0, beta=0.5, donate=True))
    assert jnp.allclose(y_d, ref, atol=1e-6, rtol=1e-6)
    assert jnp.allclose(x * 2.0 + 0.5, ref)   # caller's x untouched

    # --- non-multiple-of-128 size + traced gamma (SMEM scalar + tail pad) ---
    x_odd = jax.random.normal(k1, (3, 5, 7), dtype=jnp.float32)
    y_odd = jax.block_until_ready(
        ms_pallas(x_odd, gamma=jnp.asarray(1.5, jnp.float32), beta=0.25))
    assert jnp.allclose(y_odd, x_odd * 1.5 + 0.25, atol=1e-6, rtol=1e-6)

    # --- multi-block grid with a masked trailing partial block ---
    x_big = jax.random.normal(k2, (2000, 128), dtype=jnp.float32)
    y_big = jax.block_until_ready(
        ms_pallas(x_big, gamma=0.5, beta=-1.0, block_bytes=64 * 1024))
    assert jnp.allclose(y_big, x_big * 0.5 - 1.0, atol=1e-6, rtol=1e-6)

    # --- bf16 input stays in bf16 compute (no f32 promotion) ---
    xb = x.astype(jnp.bfloat16)
    yb = jax.block_until_ready(ms_pallas(xb, gamma=2.0, beta=0.5))
    assert yb.dtype == jnp.bfloat16
    assert jnp.allclose(yb.astype(jnp.float32),
                        xb.astype(jnp.float32) * 2.0 + 0.5, atol=1e-2, rtol=1e-2)

    print("KERNEL_OK")
</pallas_src>

<mosaic_0001>
module attributes {stable_mosaic.version = 11 : i64} {
  func.func @kernel(%arg0: i32, %arg1: memref<16x128xf32, #tpu.memory_space<vmem>>, %arg2: memref<16x128xf32, #tpu.memory_space<vmem>>) attributes {dimension_semantics = [#tpu.dimension_semantics<parallel>], iteration_bounds = array<i64: 1>, scalar_prefetch = 0 : i64, scratch_operands = 0 : i64, tpu.core_type = #tpu.core_type<tc>, window_params = [{transform_indices = @transform_0, window_bounds = array<i64: 16, 128>}, {transform_indices = @transform_1, window_bounds = array<i64: 16, 128>}]} {
    %c0 = arith.constant 0 : index
    %c0_0 = arith.constant 0 : index
    %0 = vector.load %arg1[%c0, %c0_0] : memref<16x128xf32, #tpu.memory_space<vmem>>, vector<16x128xf32>
    %cst = arith.constant 2.000000e+00 : f32
    %1 = vector.broadcast %cst : f32 to vector<16x128xf32>
    %2 = arith.mulf %0, %1 : vector<16x128xf32>
    %cst_1 = arith.constant 5.000000e-01 : f32
    %3 = vector.broadcast %cst_1 : f32 to vector<16x128xf32>
    %4 = arith.addf %2, %3 : vector<16x128xf32>
    %c0_2 = arith.constant 0 : index
    %c0_3 = arith.constant 0 : index
    %5 = vector.load %arg2[%c0_2, %c0_3] : memref<16x128xf32, #tpu.memory_space<vmem>>, vector<16x128xf32>
    tpu.vector_store %arg2[%c0_2, %c0_3], %4 {strides = array<i32>} : memref<16x128xf32, #tpu.memory_space<vmem>>, vector<16x128xf32>,
    return
  }
  func.func @transform_0(%arg0: i32) -> (i32, i32) {
    %c0_i32 = arith.constant 0 : i32
    %c0_i32_0 = arith.constant 0 : i32
    return %arg0, %c0_i32 : i32, i32
  }
  func.func @transform_1(%arg0: i32) -> (i32, i32) {
    %c0_i32 = arith.constant 0 : i32
    %c0_i32_0 = arith.constant 0 : i32
    return %arg0, %c0_i32 : i32, i32
  }
}

</mosaic_0001>

<llo_original>
// kernel: tpu_custom_call.1
$region0: #{tpu_custom_call.1}
  #allocation0 [shape = 'u32[]', space=smem, size = 0x4, offset = 0x4, fixed_abs, tag = 'smem constant byte address 0x4 - core index']
  #allocation1 [shape = 'u32[72,128]{1,0:T(1,128)}', space=vmem, size = 0x9000, scoped, tag = 'internal scratch']
  %s0 = inlined_call_operand.hbm [shape: f32[16,128], index: 0, kind: input, shape index: {}]
  %s1 = inlined_call_operand.hbm [shape: f32[16,128], index: 1, kind: output, shape index: {}]
  %s2 = sld [smem:[#allocation0]]
  $region18: #{tpu_custom_call.1} parent=0
    _
  %s4 = ssub.s32 1, %s2
  %s5 = scalar_select 0, %s4, %s2
  $region1: #{tpu_custom_call.1} parent=0
    #allocation2 [shape = 'u8[8192]{0}', space=vmem, size = 0x2000, scoped, tag = 'input window, operand 0, single buffered']
    #allocation3 [shape = 's32[1]{0}', space=sflag, size = 0x4, scoped, tag = 'scoped memory for tpu_custom_call.1']
    #allocation4 [shape = 's32[1]{0}', space=sflag, size = 0x4, scoped, tag = 'scoped memory for tpu_custom_call.1']
    #allocation5 [shape = 'u8[8192]{0}', space=vmem, size = 0x2000, scoped, tag = 'output window, operand 0, single buffered']
    %6 = vsyncpa [#allocation3], 0
    %7 = vsyncpa [#allocation4], 0
    // Predicated region
    $region2: #{tpu_custom_call.1} parent=1 // pred_check
      _
    $region3: #{tpu_custom_call.1} parent=1 // pred_check_branch
      %9 = sbr.rel (0) target = $region5
    $region4: #{tpu_custom_call.1} parent=1 // pred_region
      %11 = vsyncadd [#allocation3], 0
      %s12 = sshll.u32 %s0, 4
      %s13 = int_to_ptr.hbm [resolvable:$true] %s12
      %s14 = sshll.u32 [#allocation2], 4
      %s15 = int_to_ptr.vmem [resolvable:$true] %s14
      %20 = dma.hbm_to_vmem [thread:$0]  %s13, 256, %s15, [#allocation3], 128, 128, 8
    $region5: #{tpu_custom_call.1} parent=1 // pred_fallthru
      _
    // Predicated region
    $region6: #{tpu_custom_call.1} parent=1 // pred_check
      _
    $region7: #{tpu_custom_call.1} parent=1 // pred_check_branch
      %22 = sbr.rel (0) target = $region9
    $region8: #{tpu_custom_call.1} parent=1 // pred_region
      %24 = dma.done [#allocation3], 256
    $region9: #{tpu_custom_call.1} parent=1 // pred_fallthru
      _
    %v25 = vld [vmem:[#allocation2] sm:$0xff]
    %v26 = vld [vmem:[#allocation2 + $0x8] sm:$0xff]
    %v27 = vmul.f32 %v25, 2.0
    %v28 = vmul.f32 %v26, 2.0
    %v29 = vadd.f32 %v27, 0.5
    %v30 = vadd.f32 %v28, 0.5
    %31 = vst [vmem:[#allocation5] sm:$0xff] %v29
    %32 = vst [vmem:[#allocation5 + $0x8] sm:$0xff] %v30
    // Predicated region
    $region10: #{tpu_custom_call.1} parent=1 // pred_check
      _
    $region11: #{tpu_custom_call.1} parent=1 // pred_check_branch
      %34 = sbr.rel (0) target = $region13
    $region12: #{tpu_custom_call.1} parent=1 // pred_region
      %36 = vsyncadd [#allocation4], 0
      %s37 = sshll.u32 [#allocation5], 4
      %s38 = int_to_ptr.vmem [resolvable:$true] %s37
      %s39 = sshll.u32 %s1, 4
      %s40 = int_to_ptr.hbm [resolvable:$true] %s39
      %45 = dma.vmem_to_hbm [thread:$0]  %s38, 256, %s40, [#allocation4], 128, 128, 8
    $region13: #{tpu_custom_call.1} parent=1 // pred_fallthru
      _
    // Predicated region
    $region14: #{tpu_custom_call.1} parent=1 // pred_check
      _
    $region15: #{tpu_custom_call.1} parent=1 // pred_check_branch
      %47 = sbr.rel (0) target = $region17
    $region16: #{tpu_custom_call.1} parent=1 // pred_region
      %49 = dma.done [#allocation4], 256
    $region17: #{tpu_custom_call.1} parent=1 // pred_fallthru
      _
    %50 = vsyncpa [#allocation3], 1
    %51 = vsyncpa [#allocation4], 1

</llo_original>
